<compile_context>
chip_gen: v7x
topology: tpu7x:2x2x1
jax: 0.10.0
libtpu: 0.0.40
codegen_flags: <defaults>
</compile_context>

<pallas_src>
import functools

import jax
import jax.numpy as jnp
from jax import lax
from jax.experimental import pallas as pl
from jax.experimental.pallas import tpu as pltpu


# ----------------------------------------------------------------------------
# Kernel 1: fused 1x1 conv (bf16 MXU matmul) + folded-BN bias + SiLU
# ----------------------------------------------------------------------------
def _conv1x1_bn_silu_kernel(x_ref, w_ref, b_ref, o_ref):
    # x_ref: (TM, Cin), w_ref: (Cin, Cout) bf16 (BN scale pre-folded),
    # b_ref: (1, Cout) f32, o_ref: (TM, Cout)
    x = x_ref[...].astype(jnp.bfloat16)
    y = jnp.dot(x, w_ref[...], preferred_element_type=jnp.float32)
    y = y + b_ref[...]
    # SiLU: exp and approx reciprocal both go to the EUP slot (frees VALU).
    y = y * pl.reciprocal(1.0 + jnp.exp(-y), approx=True)
    o_ref[...] = y.astype(o_ref.dtype)


def conv1x1_bn_silu(x2d, w_bf16, bias, out_dtype=jnp.bfloat16, tile_m=512):
    M, Cin = x2d.shape
    Cout = w_bf16.shape[1]
    tm = M if M <= tile_m else tile_m          # tm == M or tm == 512 (8-aligned)
    return pl.pallas_call(
        _conv1x1_bn_silu_kernel,
        out_shape=jax.ShapeDtypeStruct((M, Cout), out_dtype),
        grid_spec=pltpu.PrefetchScalarGridSpec(
            num_scalar_prefetch=0,
            grid=(pl.cdiv(M, tm),),
            in_specs=[
                pl.BlockSpec((tm, Cin), lambda i: (i, 0)),
                pl.BlockSpec((Cin, Cout), lambda i: (0, 0)),
                pl.BlockSpec((1, Cout), lambda i: (0, 0)),
            ],
            out_specs=pl.BlockSpec((tm, Cout), lambda i: (i, 0)),
        ),
        compiler_params=pltpu.CompilerParams(dimension_semantics=("parallel",)),
    )(x2d, w_bf16, bias)


# ----------------------------------------------------------------------------
# Kernel 2: fused SPP (cascaded 5x5 max pools) + 1x1 conv2 + BN + SiLU
# The concat is never materialized: each branch's contribution is accumulated
# into the resident output block via branch @ W2[branch].
# ----------------------------------------------------------------------------
def _spp_conv2_kernel(h_ref, w2_ref, b2_ref, o_ref, pad_ref, *, pool_counts):
    # h_ref:   (1, H, W, CB) bf16   -- hidden-channel block of conv1 output
    # w2_ref:  (NB, CB, Cout) bf16  -- per-branch conv2 weight slab (scale folded)
    # b2_ref:  (1, Cout) f32
    # o_ref:   (1, H, W, Cout) f32  -- resident accumulator across channel blocks
    # pad_ref: (H+4, W+4, CB)       -- -inf halo scratch for the 5x5 pools
    cb = pl.program_id(1)
    x = h_ref[0]
    H, W, CB = x.shape

    # -inf border; pool5 only ever writes the center, so borders persist.
    pad_ref[...] = jnp.full((H + 4, W + 4, CB), -jnp.inf, x.dtype)

    def pool5(t):
        # stride-1 "same" 5x5 max pool, separable, borders via the -inf halo.
        pad_ref[2:2 + H, 2:2 + W, :] = t
        m = pad_ref[2:2 + H, 0:W, :]
        for d in range(1, 5):
            m = jnp.maximum(m, pad_ref[2:2 + H, d:d + W, :])
        pad_ref[2:2 + H, 2:2 + W, :] = m
        r = pad_ref[0:H, 2:2 + W, :]
        for d in range(1, 5):
            r = jnp.maximum(r, pad_ref[d:d + H, 2:2 + W, :])
        return r

    # SPPF cascade: pool9 = pool5^2, pool13 = pool5^3.
    branches = [x]
    p = x
    done = 0
    for count in pool_counts:
        while done < count:
            p = pool5(p)
            done += 1
        branches.append(p)

    # conv2 contribution of this hidden-channel block (f32 accumulation).
    contrib = None
    for b, t in enumerate(branches):
        d = jnp.dot(t.reshape(H * W, CB), w2_ref[b],
                    preferred_element_type=jnp.float32)
        contrib = d if contrib is None else contrib + d
    contrib = contrib.reshape(H, W, -1)

    @pl.when(cb == 0)
    def _():
        o_ref[0] = contrib

    @pl.when(cb > 0)
    def _():
        o_ref[0] = o_ref[0] + contrib

    @pl.when(cb == pl.num_programs(1) - 1)
    def _():
        y = o_ref[0] + b2_ref[0]
        o_ref[0] = y * pl.reciprocal(1.0 + jnp.exp(-y), approx=True)


def spp_conv2(h_nhwc, w2_branches, bias2, pool_counts):
    N, H, W, Ch = h_nhwc.shape
    NB, _, Cout = w2_branches.shape
    cbs = 128 if Ch % 128 == 0 else Ch          # hidden-channel block size
    n_cb = Ch // cbs
    kern = functools.partial(_spp_conv2_kernel, pool_counts=tuple(pool_counts))
    # TODO(synk): for very large H*W also tile rows (with a 2-row halo per
    # cascaded pool) so the block fits v7x's 64 MiB VMEM; unnecessary here.
    return pl.pallas_call(
        kern,
        out_shape=jax.ShapeDtypeStruct((N, H, W, Cout), jnp.float32),
        grid_spec=pltpu.PrefetchScalarGridSpec(
            num_scalar_prefetch=0,
            grid=(N, n_cb),
            in_specs=[
                pl.BlockSpec((1, H, W, cbs), lambda n, c: (n, 0, 0, c)),
                pl.BlockSpec((NB, cbs, Cout), lambda n, c: (0, c, 0)),
                pl.BlockSpec((1, Cout), lambda n, c: (0, 0)),
            ],
            out_specs=pl.BlockSpec((1, H, W, Cout), lambda n, c: (n, 0, 0, 0)),
            scratch_shapes=[pltpu.VMEM((H + 4, W + 4, cbs), h_nhwc.dtype)],
        ),
        compiler_params=pltpu.CompilerParams(
            dimension_semantics=("parallel", "arbitrary")),
    )(h_nhwc, w2_branches, bias2)


# ----------------------------------------------------------------------------
# SPPBottleneck forward (glue: transposes / reshapes only)
# ----------------------------------------------------------------------------
def spp_bottleneck_forward(x_nchw, fused_params, kernel_sizes=(5, 9, 13)):
    N, Cin, H, W = x_nchw.shape
    # Cascade validity: each window must be 4k+1 so it composes from 5x5 pools.
    pool_counts = []
    for ks in kernel_sizes:
        assert ks % 2 == 1 and (ks - 1) % 4 == 0, kernel_sizes
        pool_counts.append((ks - 1) // 4)
    assert pool_counts == sorted(pool_counts), kernel_sizes
    # TODO(synk): general kernel_sizes (not of the form 4k+1) would need direct
    # per-size pooling instead of the cascaded 5x5 chain.

    x = jnp.transpose(x_nchw, (0, 2, 3, 1)).astype(jnp.float32)  # NCHW -> NHWC

    # conv1: 1x1 conv + folded BN + SiLU; output kept in bf16 for the SPP stage.
    Ch = fused_params["w1"].shape[1]
    h = conv1x1_bn_silu(x.reshape(N * H * W, Cin), fused_params["w1"],
                        fused_params["b1"], out_dtype=jnp.bfloat16)
    h = h.reshape(N, H, W, Ch)

    # Fused SPP + conv2 + BN + SiLU (no 4C concat in HBM).
    out = spp_conv2(h, fused_params["w2b"], fused_params["b2"],
                    tuple(pool_counts))
    return jnp.transpose(out, (0, 3, 1, 2))                      # back to NCHW


# ----------------------------------------------------------------------------
# Deterministic parameter init (BN in eval mode) + one-time kernel-side prep
# ----------------------------------------------------------------------------
def init_params(key, in_channels, out_channels, kernel_sizes=(5, 9, 13)):
    hidden = in_channels // 2
    c2 = hidden * (len(kernel_sizes) + 1)
    k1, k2, k3, k4 = jax.random.split(key, 4)

    def fused_bn(k, c):
        kg, kb, km, kv = jax.random.split(k, 4)
        gamma = 1.0 + 0.1 * jax.random.normal(kg, (c,), jnp.float32)
        beta = 0.1 * jax.random.normal(kb, (c,), jnp.float32)
        mean = 0.1 * jax.random.normal(km, (c,), jnp.float32)
        var = jnp.abs(jax.random.normal(kv, (c,), jnp.float32)) + 0.5
        eps = 1e-3  # matches nn.BatchNorm2d(eps=0.001)
        scale = gamma / jnp.sqrt(var + eps)
        bias = beta - mean * scale
        return scale.reshape(1, c), bias.reshape(1, c)

    # 1x1 conv weights stored as (Cin, Cout) == torch (Cout, Cin, 1, 1).T
    w1 = 0.1 * jax.random.normal(k1, (in_channels, hidden), jnp.float32)
    w2 = 0.1 * jax.random.normal(k2, (c2, out_channels), jnp.float32)
    scale1, bias1 = fused_bn(k3, hidden)
    scale2, bias2 = fused_bn(k4, out_channels)
    return dict(w1=w1, scale1=scale1, bias1=bias1,
                w2=w2, scale2=scale2, bias2=bias2)


def prepare_params(params, kernel_sizes=(5, 9, 13)):
    """One-time transform: fold BN scale into weights, cast to bf16, split w2
    into per-branch slabs (branch order matches torch.cat([x] + pools))."""
    n_branches = len(kernel_sizes) + 1
    ch = params["w1"].shape[1]
    cout = params["w2"].shape[1]
    w1 = (params["w1"] * params["scale1"]).astype(jnp.bfloat16)
    w2b = (params["w2"] * params["scale2"]).reshape(
        n_branches, ch, cout).astype(jnp.bfloat16)
    return dict(w1=w1, b1=params["bias1"], w2b=w2b, b2=params["bias2"])


# ----------------------------------------------------------------------------
# Pure-JAX f32 reference for numerical verification
# ----------------------------------------------------------------------------
def reference_forward(x_nchw, params, kernel_sizes=(5, 9, 13)):
    x = jnp.transpose(x_nchw, (0, 2, 3, 1)).astype(jnp.float32)

    def cbs(x, w, s, b):
        y = jnp.einsum("nhwc,cd->nhwd", x, w) * s.reshape(1, 1, 1, -1) \
            + b.reshape(1, 1, 1, -1)
        return y * jax.nn.sigmoid(y)

    h = cbs(x, params["w1"], params["scale1"], params["bias1"])
    pools = [h]
    for ks in kernel_sizes:
        p = ks // 2
        pools.append(lax.reduce_window(
            h, -jnp.inf, lax.max,
            window_dimensions=(1, ks, ks, 1), window_strides=(1, 1, 1, 1),
            padding=((0, 0), (p, p), (p, p), (0, 0))))
    cat = jnp.concatenate(pools, axis=-1)
    out = cbs(cat, params["w2"], params["scale2"], params["bias2"])
    return jnp.transpose(out, (0, 3, 1, 2))


if __name__ == "__main__":
    key = jax.random.PRNGKey(0)
    kx, kp = jax.random.split(key)

    N, Cin, H, W = 2, 4, 16, 16
    Cout = 8
    x = jax.random.normal(kx, (N, Cin, H, W), jnp.float32)
    params = init_params(kp, Cin, Cout)
    fused = prepare_params(params)

    out = spp_bottleneck_forward(x, fused)
    out = jax.block_until_ready(out)

    ref = reference_forward(x, params)
    assert out.shape == (N, Cout, H, W), out.shape
    max_err = jnp.max(jnp.abs(out - ref))
    # bf16 matmuls / bf16 hidden activation -> compare against f32 reference
    # with a bf16-appropriate tolerance.
    assert jnp.allclose(out, ref, atol=2e-2, rtol=2e-2), f"max abs err {max_err}"

    print("KERNEL_OK")
</pallas_src>

<mosaic_0001>
module attributes {stable_mosaic.version = 11 : i64} {
  func.func @_conv1x1_bn_silu_kernel(%arg0: i32, %arg1: memref<512x4xf32, #tpu.memory_space<vmem>>, %arg2: memref<4x2xbf16, #tpu.memory_space<vmem>>, %arg3: memref<1x2xf32, #tpu.memory_space<vmem>>, %arg4: memref<512x2xbf16, #tpu.memory_space<vmem>>) attributes {dimension_semantics = [#tpu.dimension_semantics<parallel>], iteration_bounds = array<i64: 1>, scalar_prefetch = 0 : i64, scratch_operands = 0 : i64, tpu.core_type = #tpu.core_type<tc>, window_params = [{transform_indices = @transform_0, window_bounds = array<i64: 512, 4>}, {pipeline_mode = #tpu.pipeline_mode<synchronous>, transform_indices = @transform_1, window_bounds = array<i64: 4, 2>}, {pipeline_mode = #tpu.pipeline_mode<synchronous>, transform_indices = @transform_2, window_bounds = array<i64: 1, 2>}, {transform_indices = @transform_3, window_bounds = array<i64: 512, 2>}]} {
    %c0 = arith.constant 0 : index
    %c0_0 = arith.constant 0 : index
    %0 = vector.load %arg1[%c0, %c0_0] : memref<512x4xf32, #tpu.memory_space<vmem>>, vector<512x4xf32>
    %1 = arith.truncf %0 : vector<512x4xf32> to vector<512x4xbf16>
    %c0_1 = arith.constant 0 : index
    %c0_2 = arith.constant 0 : index
    %2 = vector.load %arg2[%c0_1, %c0_2] : memref<4x2xbf16, #tpu.memory_space<vmem>>, vector<4x2xbf16>
    %cst = arith.constant dense<0.000000e+00> : vector<512x2xf32>
    %3 = tpu.matmul %1, %2, %cst {dimension_numbers = #tpu.dot_dimension_numbers<[1], [0], [0], [1], [0, 0, 1, 1], [], []>} : vector<512x4xbf16>, vector<4x2xbf16>, vector<512x2xf32> -> vector<512x2xf32>
    %c0_3 = arith.constant 0 : index
    %c0_4 = arith.constant 0 : index
    %4 = vector.load %arg3[%c0_3, %c0_4] : memref<1x2xf32, #tpu.memory_space<vmem>>, vector<1x2xf32>
    %5 = vector.broadcast %4 : vector<1x2xf32> to vector<512x2xf32>
    %6 = arith.addf %3, %5 : vector<512x2xf32>
    %cst_5 = arith.constant 0.000000e+00 : f32
    %7 = vector.broadcast %cst_5 : f32 to vector<512x2xf32>
    %8 = arith.subf %7, %6 : vector<512x2xf32>
    %9 = math.exp %8 : vector<512x2xf32>
    %cst_6 = arith.constant 1.000000e+00 : f32
    %10 = vector.broadcast %cst_6 : f32 to vector<512x2xf32>
    %11 = arith.addf %10, %9 : vector<512x2xf32>
    %12 = tpu.reciprocal %11 {approx = true} : vector<512x2xf32> -> vector<512x2xf32>
    %13 = arith.mulf %6, %12 : vector<512x2xf32>
    %14 = arith.truncf %13 : vector<512x2xf32> to vector<512x2xbf16>
    %c0_7 = arith.constant 0 : index
    %c0_8 = arith.constant 0 : index
    %15 = vector.load %arg4[%c0_7, %c0_8] : memref<512x2xbf16, #tpu.memory_space<vmem>>, vector<512x2xbf16>
    tpu.vector_store %arg4[%c0_7, %c0_8], %14 {strides = array<i32>} : memref<512x2xbf16, #tpu.memory_space<vmem>>, vector<512x2xbf16>,
    return
  }
  func.func @transform_0(%arg0: i32) -> (i32, i32) {
    %c0_i32 = arith.constant 0 : i32
    %c0_i32_0 = arith.constant 0 : i32
    return %arg0, %c0_i32 : i32, i32
  }
  func.func @transform_1(%arg0: i32) -> (i32, i32) {
    %c0_i32 = arith.constant 0 : i32
    %c0_i32_0 = arith.constant 0 : i32
    %c0_i32_1 = arith.constant 0 : i32
    return %c0_i32, %c0_i32_0 : i32, i32
  }
  func.func @transform_2(%arg0: i32) -> (i32, i32) {
    %c0_i32 = arith.constant 0 : i32
    %c0_i32_0 = arith.constant 0 : i32
    %c0_i32_1 = arith.constant 0 : i32
    return %c0_i32, %c0_i32_0 : i32, i32
  }
  func.func @transform_3(%arg0: i32) -> (i32, i32) {
    %c0_i32 = arith.constant 0 : i32
    %c0_i32_0 = arith.constant 0 : i32
    return %arg0, %c0_i32 : i32, i32
  }
}

</mosaic_0001>

<llo_original>
// kernel: tpu_custom_call.1
$region0: #{tpu_custom_call.1}
  #allocation0 [shape = 'u32[]', space=smem, size = 0x4, offset = 0x4, fixed_abs, tag = 'smem constant byte address 0x4 - core index']
  #allocation1 [shape = 'u32[144,128]{1,0:T(1,128)}', space=vmem, size = 0x12000, scoped, tag = 'internal scratch']
  %s0 = inlined_call_operand.vmem [shape: f32[512,4], index: 0, kind: input, shape index: {}]
  %s1 = inlined_call_operand.vmem [shape: bf16[4,2], index: 1, kind: input, shape index: {}]
  %s2 = inlined_call_operand.vmem [shape: f32[1,2], index: 2, kind: input, shape index: {}]
  %s3 = inlined_call_operand.vmem [shape: bf16[512,2], index: 3, kind: output, shape index: {}]
  %s4 = sld [smem:[#allocation0]]
  $region22: #{tpu_custom_call.1} parent=0
    _
  %s6 = ssub.s32 1, %s4
  %s7 = scalar_select 0, %s6, %s4
  // Predicated region
  $region2: #{tpu_custom_call.1} parent=0 // pred_check
    _
  $region3: #{tpu_custom_call.1} parent=0 // pred_check_branch
    %9 = sbr.rel (0) target = $region5
  $region4: #{tpu_custom_call.1} parent=0 // pred_region
    _
  $region5: #{tpu_custom_call.1} parent=0 // pred_fallthru
    _
  // Predicated region
  $region6: #{tpu_custom_call.1} parent=0 // pred_check
    _
  $region7: #{tpu_custom_call.1} parent=0 // pred_check_branch
    %11 = sbr.rel (0) target = $region9
  $region8: #{tpu_custom_call.1} parent=0 // pred_region
    _
  $region9: #{tpu_custom_call.1} parent=0 // pred_fallthru
    _
  // Predicated region
  $region10: #{tpu_custom_call.1} parent=0 // pred_check
    _
  $region11: #{tpu_custom_call.1} parent=0 // pred_check_branch
    %13 = sbr.rel (0) target = $region13
  $region12: #{tpu_custom_call.1} parent=0 // pred_region
    _
  $region13: #{tpu_custom_call.1} parent=0 // pred_fallthru
    _
  %v15 = vld [vmem:[%s0] sm:$0xff]
  %v16 = vld [vmem:[%s0 + $0x8] sm:$0xff]
  %v17 = vld [vmem:[%s0 + $0x10] sm:$0xff]
  %v18 = vld [vmem:[%s0 + $0x18] sm:$0xff]
  %v19 = vld [vmem:[%s0 + $0x20] sm:$0xff]
  %v20 = vld [vmem:[%s0 + $0x28] sm:$0xff]
  %v21 = vld [vmem:[%s0 + $0x30] sm:$0xff]
  %v22 = vld [vmem:[%s0 + $0x38] sm:$0xff]
  %v23 = vld [vmem:[%s0 + $0x40] sm:$0xff]
  %v24 = vld [vmem:[%s0 + $0x48] sm:$0xff]
  %v25 = vld [vmem:[%s0 + $0x50] sm:$0xff]
  %v26 = vld [vmem:[%s0 + $0x58] sm:$0xff]
  %v27 = vld [vmem:[%s0 + $0x60] sm:$0xff]
  %v28 = vld [vmem:[%s0 + $0x68] sm:$0xff]
  %v29 = vld [vmem:[%s0 + $0x70] sm:$0xff]
  %v30 = vld [vmem:[%s0 + $0x78] sm:$0xff]
  %v31 = vld [vmem:[%s0 + $0x80] sm:$0xff]
  %v32 = vld [vmem:[%s0 + $0x88] sm:$0xff]
  %v33 = vld [vmem:[%s0 + $0x90] sm:$0xff]
  %v34 = vld [vmem:[%s0 + $0x98] sm:$0xff]
  %v35 = vld [vmem:[%s0 + $0xa0] sm:$0xff]
  %v36 = vld [vmem:[%s0 + $0xa8] sm:$0xff]
  %v37 = vld [vmem:[%s0 + $0xb0] sm:$0xff]
  %v38 = vld [vmem:[%s0 + $0xb8] sm:$0xff]
  %v39 = vld [vmem:[%s0 + $0xc0] sm:$0xff]
  %v40 = vld [vmem:[%s0 + $0xc8] sm:$0xff]
  %v41 = vld [vmem:[%s0 + $0xd0] sm:$0xff]
  %v42 = vld [vmem:[%s0 + $0xd8] sm:$0xff]
  %v43 = vld [vmem:[%s0 + $0xe0] sm:$0xff]
  %v44 = vld [vmem:[%s0 + $0xe8] sm:$0xff]
  %v45 = vld [vmem:[%s0 + $0xf0] sm:$0xff]
  %v46 = vld [vmem:[%s0 + $0xf8] sm:$0xff]
  %v47 = vld [vmem:[%s0 + $0x100] sm:$0xff]
  %v48 = vld [vmem:[%s0 + $0x108] sm:$0xff]
  %v49 = vld [vmem:[%s0 + $0x110] sm:$0xff]
  %v50 = vld [vmem:[%s0 + $0x118] sm:$0xff]
  %v51 = vld [vmem:[%s0 + $0x120] sm:$0xff]
  %v52 = vld [vmem:[%s0 + $0x128] sm:$0xff]
  %v53 = vld [vmem:[%s0 + $0x130] sm:$0xff]
  %v54 = vld [vmem:[%s0 + $0x138] sm:$0xff]
  %v55 = vld [vmem:[%s0 + $0x140] sm:$0xff]
  %v56 = vld [vmem:[%s0 + $0x148] sm:$0xff]
  %v57 = vld [vmem:[%s0 + $0x150] sm:$0xff]
  %v58 = vld [vmem:[%s0 + $0x158] sm:$0xff]
  %v59 = vld [vmem:[%s0 + $0x160] sm:$0xff]
  %v60 = vld [vmem:[%s0 + $0x168] sm:$0xff]
  %v61 = vld [vmem:[%s0 + $0x170] sm:$0xff]
  %v62 = vld [vmem:[%s0 + $0x178] sm:$0xff]
  %v63 = vld [vmem:[%s0 + $0x180] sm:$0xff]
  %v64 = vld [vmem:[%s0 + $0x188] sm:$0xff]
  %v65 = vld [vmem:[%s0 + $0x190] sm:$0xff]
  %v66 = vld [vmem:[%s0 + $0x198] sm:$0xff]
  %v67 = vld [vmem:[%s0 + $0x1a0] sm:$0xff]
  %v68 = vld [vmem:[%s0 + $0x1a8] sm:$0xff]
  %v69 = vld [vmem:[%s0 + $0x1b0] sm:$0xff]
  %v70 = vld [vmem:[%s0 + $0x1b8] sm:$0xff]
  %v71 = vld [vmem:[%s0 + $0x1c0] sm:$0xff]
  %v72 = vld [vmem:[%s0 + $0x1c8] sm:$0xff]
  %v73 = vld [vmem:[%s0 + $0x1d0] sm:$0xff]
  %v74 = vld [vmem:[%s0 + $0x1d8] sm:$0xff]
  %v75 = vld [vmem:[%s0 + $0x1e0] sm:$0xff]
  %v76 = vld [vmem:[%s0 + $0x1e8] sm:$0xff]
  %v77 = vld [vmem:[%s0 + $0x1f0] sm:$0xff]
  %v78 = vld [vmem:[%s0 + $0x1f8] sm:$0xff]
  %v79 = vpack.c.bf16 %v16, %v15
  %v80 = vpack.c.bf16 %v18, %v17
  %v81 = vpack.c.bf16 %v20, %v19
  %v82 = vpack.c.bf16 %v22, %v21
  %v83 = vpack.c.bf16 %v24, %v23
  %v84 = vpack.c.bf16 %v26, %v25
  %v85 = vpack.c.bf16 %v28, %v27
  %v86 = vpack.c.bf16 %v30, %v29
  %v87 = vpack.c.bf16 %v32, %v31
  %v88 = vpack.c.bf16 %v34, %v33
  %v89 = vpack.c.bf16 %v36, %v35
  %v90 = vpack.c.bf16 %v38, %v37
  %v91 = vpack.c.bf16 %v40, %v39
  %v92 = vpack.c.bf16 %v42, %v41
  %v93 = vpack.c.bf16 %v44, %v43
  %v94 = vpack.c.bf16 %v46, %v45
  %v95 = vpack.c.bf16 %v48, %v47
  %v96 = vpack.c.bf16 %v50, %v49
  %v97 = vpack.c.bf16 %v52, %v51
  %v98 = vpack.c.bf16 %v54, %v53
  %v99 = vpack.c.bf16 %v56, %v55
  %v100 = vpack.c.bf16 %v58, %v57
  %v101 = vpack.c.bf16 %v60, %v59
  %v102 = vpack.c.bf16 %v62, %v61
  %v103 = vpack.c.bf16 %v64, %v63
  %v104 = vpack.c.bf16 %v66, %v65
  %v105 = vpack.c.bf16 %v68, %v67
  %v106 = vpack.c.bf16 %v70, %v69
  %v107 = vpack.c.bf16 %v72, %v71
  %v108 = vpack.c.bf16 %v74, %v73
  %v109 = vpack.c.bf16 %v76, %v75
  %v110 = vpack.c.bf16 %v78, %v77
  %v111 = vld [vmem:[%s1] sm:$0x3]
  %v112 = vld [vmem:[%s2] sm:$0x1]
  %v114 = vlaneseq
  %v115 = vshrl.u32 %v114, 7
  %v116 = vsub.s32 0, %v115
  %v117 = vrot.slane %v112, %v116
  %vm119 = vcmask 31744
  %v121 = vsel %vm119, %v79, 0
  %v124 = vsel %vm119, %v80, 0
  %v127 = vsel %vm119, %v81, 0
  %v130 = vsel %vm119, %v82, 0
  %v133 = vsel %vm119, %v83, 0
  %v136 = vsel %vm119, %v84, 0
  %v139 = vsel %vm119, %v85, 0
  %v142 = vsel %vm119, %v86, 0
  %v145 = vsel %vm119, %v87, 0
  %v148 = vsel %vm119, %v88, 0
  %v151 = vsel %vm119, %v89, 0
  %v154 = vsel %vm119, %v90, 0
  %v157 = vsel %vm119, %v91, 0
  %v160 = vsel %vm119, %v92, 0
  %v163 = vsel %vm119, %v93, 0
  %v166 = vsel %vm119, %v94, 0
  %v169 = vsel %vm119, %v95, 0
  %v172 = vsel %vm119, %v96, 0
  %v175 = vsel %vm119, %v97, 0
  %v178 = vsel %vm119, %v98, 0
  %v181 = vsel %vm119, %v99, 0
  %v184 = vsel %vm119, %v100, 0
  %v187 = vsel %vm119, %v101, 0
  %v190 = vsel %vm119, %v102, 0
  %v193 = vsel %vm119, %v103, 0
  %v196 = vsel %vm119, %v104, 0
  %v199 = vsel %vm119, %v105, 0
  %v202 = vsel %vm119, %v106, 0
  %v205 = vsel %vm119, %v107, 0
  %v208 = vsel %vm119, %v108, 0
  %v211 = vsel %vm119, %v109, 0
  %v214 = vsel %vm119, %v110, 0
  %vm216 = vcmask 1041408
  %v218 = vsel %vm216, %v111, 0
  %220 = vmatprep.subr.bf16.mxu0 0
  %221 = vmatpush1.bf16.msra.mxu0 %v218
  %222 = vmatprep.subr.bf16.mxu0 0
  %223 = vmatpush1.bf16.msra.mxu0 0
  %224 = vmatprep.subr.bf16.mxu0 0
  %225 = vmatpush1.bf16.msra.mxu0 0
  %226 = vmatprep.subr.bf16.mxu0 0
  %227 = vmatpush1.bf16.msra.mxu0 0
  %228 = vmatprep.subr.bf16.mxu0 0
  %229 = vmatpush1.bf16.msra.mxu0 0
  %230 = vmatprep.subr.bf16.mxu0 0
  %231 = vmatpush1.bf16.msra.mxu0 0
  %232 = vmatprep.subr.bf16.mxu0 0
  %233 = vmatpush1.bf16.msra.mxu0 0
  %234 = vmatprep.subr.bf16.mxu0 0
  %235 = vmatpush1.bf16.msra.mxu0 0
  %236 = vmatprep.subr.bf16.mxu0 0
  %237 = vmatpush1.bf16.msra.mxu0 0
  %238 = vmatprep.subr.bf16.mxu0 0
  %239 = vmatpush1.bf16.msra.mxu0 0
  %240 = vmatprep.subr.bf16.mxu0 0
  %241 = vmatpush1.bf16.msra.mxu0 0
  %242 = vmatprep.subr.bf16.mxu0 0
  %243 = vmatpush1.bf16.msra.mxu0 0
  %244 = vmatprep.subr.bf16.mxu0 0
  %245 = vmatpush1.bf16.msra.mxu0 0
  %246 = vmatprep.subr.bf16.mxu0 0
  %247 = vmatpush1.bf16.msra.mxu0 0
  %248 = vmatprep.subr.bf16.mxu0 0
  %249 = vmatpush1.bf16.msra.mxu0 0
  %250 = vmatprep.subr.bf16.mxu0 0
  %251 = vmatpush1.bf16.msra.mxu0 0
  %252 = vmatprep.mubr.bf16.mxu0 0
  %253 = vmatmul.mubr.bf16.gmra.mrb[0].mxu0 %v121
  %v254 = vpop.f32.mrb[0].mxu0
  %v255 = vadd.f32 %v117, %v254
  %v256 = vpop.f32.mrb[0].mxu0
  %v257 = vpop.f32.mrb[0].mxu0
  %v258 = vadd.f32 %v117, %v257
  %v259 = vpop.f32.mrb[0].mxu0
  %260 = vmatprep.mubr.bf16.mxu0 0
  %261 = vmatmul.mubr.bf16.gmra.mrb[0].mxu0 %v124
  %v262 = vpop.f32.mrb[0].mxu0
  %v263 = vadd.f32 %v117, %v262
  %v264 = vpop.f32.mrb[0].mxu0
  %v265 = vpop.f32.mrb[0].mxu0
  %v266 = vadd.f32 %v117, %v265
  %v267 = vpop.f32.mrb[0].mxu0
  %268 = vmatprep.mubr.bf16.mxu0 0
  %269 = vmatmul.mubr.bf16.gmra.mrb[0].mxu0 %v127
  %v270 = vpop.f32.mrb[0].mxu0
  %v271 = vadd.f32 %v117, %v270
  %v272 = vpop.f32.mrb[0].mxu0
  %v273 = vpop.f32.mrb[0].mxu0
  %v274 = vadd.f32 %v117, %v273
  %v275 = vpop.f32.mrb[0].mxu0
  %276 = vmatprep.mubr.bf16.mxu0 0
  %277 = vmatmul.mubr.bf16.gmra.mrb[0].mxu0 %v130
  %v278 = vpop.f32.mrb[0].mxu0
  %v279 = vadd.f32 %v117, %v278
  %v280 = vpop.f32.mrb[0].mxu0
  %v281 = vpop.f32.mrb[0].mxu0
  %v282 = vadd.f32 %v117, %v281
  %v283 = vpop.f32.mrb[0].mxu0
  %284 = vmatprep.mubr.bf16.mxu0 0
  %285 = vmatmul.mubr.bf16.gmra.mrb[0].mxu0 %v133
  %v286 = vpop.f32.mrb[0].mxu0
  %v287 = vadd.f32 %v117, %v286
  %v288 = vpop.f32.mrb[0].mxu0
  %v289 = vpop.f32.mrb[0].mxu0
  %v290 = vadd.f32 %v117, %v289
  %v291 = vpop.f32.mrb[0].mxu0
  %292 = vmatprep.mubr.bf16.mxu0 0
  %293 = vmatmul.mubr.bf16.gmra.mrb[0].mxu0 %v136
  %v294 = vpop.f32.mrb[0].mxu0
  %v295 = vadd.f32 %v117, %v294
  %v296 = vpop.f32.mrb[0].mxu0
  %v297 = vpop.f32.mrb[0].mxu0
  %v298 = vadd.f32 %v117, %v297
  %v299 = vpop.f32.mrb[0].mxu0
  %300 = vmatprep.mubr.bf16.mxu0 0
  %301 = vmatmul.mubr.bf16.gmra.mrb[0].mxu0 %v139
  %v302 = vpop.f32.mrb[0].mxu0
  %v303 = vadd.f32 %v117, %v302
  %v304 = vpop.f32.mrb[0].mxu0
  %v305 = vpop.f32.mrb[0].mxu0
  %v306 = vadd.f32 %v117, %v305
  %v307 = vpop.f32.mrb[0].mxu0
  %308 = vmatprep.mubr.bf16.mxu0 0
  %309 = vmatmul.mubr.bf16.gmra.mrb[0].mxu0 %v142
  %v310 = vpop.f32.mrb[0].mxu0
  %v311 = vadd.f32 %v117, %v310
  %v312 = vpop.f32.mrb[0].mxu0
  %v313 = vpop.f32.mrb[0].mxu0
  %v314 = vadd.f32 %v117, %v313
  %v315 = vpop.f32.mrb[0].mxu0
  %316 = vmatprep.mubr.bf16.mxu0 0
  %317 = vmatmul.mubr.bf16.gmra.mrb[0].mxu0 %v145
  %v318 = vpop.f32.mrb[0].mxu0
  %v319 = vadd.f32 %v117, %v318
  %v320 = vpop.f32.mrb[0].mxu0
  %v321 = vpop.f32.mrb[0].mxu0
  %v322 = vadd.f32 %v117, %v321
  %v323 = vpop.f32.mrb[0].mxu0
  %324 = vmatprep.mubr.bf16.mxu0 0
  %325 = vmatmul.mubr.bf16.gmra.mrb[0].mxu0 %v148
  %v326 = vpop.f32.mrb[0].mxu0
  %v327 = vadd.f32 %v117, %v326
  %v328 = vpop.f32.mrb[0].mxu0
  %v329 = vpop.f32.mrb[0].mxu0
  %v330 = vadd.f32 %v117, %v329
  %v331 = vpop.f32.mrb[0].mxu0
  %332 = vmatprep.mubr.bf16.mxu0 0
  %333 = vmatmul.mubr.bf16.gmra.mrb[0].mxu0 %v151
  %v334 = vpop.f32.mrb[0].mxu0
  %v335 = vadd.f32 %v117, %v334
  %v336 = vpop.f32.mrb[0].mxu0
  %v337 = vpop.f32.mrb[0].mxu0
  %v338 = vadd.f32 %v117, %v337
  %v339 = vpop.f32.mrb[0].mxu0
  %340 = vmatprep.mubr.bf16.mxu0 0
  %341 = vmatmul.mubr.bf16.gmra.mrb[0].mxu0 %v154
  %v342 = vpop.f32.mrb[0].mxu0
  %v343 = vadd.f32 %v117, %v342
  %v344 = vpop.f32.mrb[0].mxu0
  %v345 = vpop.f32.mrb[0].mxu0
  %v346 = vadd.f32 %v117, %v345
  %v347 = vpop.f32.mrb[0].mxu0
  %348 = vmatprep.mubr.bf16.mxu0 0
  %349 = vmatmul.mubr.bf16.gmra.mrb[0].mxu0 %v157
  %v350 = vpop.f32.mrb[0].mxu0
  %v351 = vadd.f32 %v117, %v350
  %v352 = vpop.f32.mrb[0].mxu0
  %v353 = vpop.f32.mrb[0].mxu0
  %v354 = vadd.f32 %v117, %v353
  %v355 = vpop.f32.mrb[0].mxu0
  %356 = vmatprep.mubr.bf16.mxu0 0
  %357 = vmatmul.mubr.bf16.gmra.mrb[0].mxu0 %v160
  %v358 = vpop.f32.mrb[0].mxu0
  %v359 = vadd.f32 %v117, %v358
  %v360 = vpop.f32.mrb[0].mxu0
  %v361 = vpop.f32.mrb[0].mxu0
  %v362 = vadd.f32 %v117, %v361
  %v363 = vpop.f32.mrb[0].mxu0
  %364 = vmatprep.mubr.bf16.mxu0 0
  %365 = vmatmul.mubr.bf16.gmra.mrb[0].mxu0 %v163
  %v366 = vpop.f32.mrb[0].mxu0
  %v367 = vadd.f32 %v117, %v366
  %v368 = vpop.f32.mrb[0].mxu0
  %v369 = vpop.f32.mrb[0].mxu0
  %v370 = vadd.f32 %v117, %v369
  %v371 = vpop.f32.mrb[0].mxu0
  %372 = vmatprep.mubr.bf16.mxu0 0
  %373 = vmatmul.mubr.bf16.gmra.mrb[0].mxu0 %v166
  %v374 = vpop.f32.mrb[0].mxu0
  %v375 = vadd.f32 %v117, %v374
  %v376 = vpop.f32.mrb[0].mxu0
  %v377 = vpop.f32.mrb[0].mxu0
  %v378 = vadd.f32 %v117, %v377
  %v379 = vpop.f32.mrb[0].mxu0
  %380 = vmatprep.mubr.bf16.mxu0 0
  %381 = vmatmul.mubr.bf16.gmra.mrb[0].mxu0 %v169
  %v382 = vpop.f32.mrb[0].mxu0
  %v383 = vadd.f32 %v117, %v382
  %v384 = vpop.f32.mrb[0].mxu0
  %v385 = vpop.f32.mrb[0].mxu0
  %v386 = vadd.f32 %v117, %v385
  %v387 = vpop.f32.mrb[0].mxu0
  %388 = vmatprep.mubr.bf16.mxu0 0
  %389 = vmatmul.mubr.bf16.gmra.mrb[0].mxu0 %v172
  %v390 = vpop.f32.mrb[0].mxu0
  %v391 = vadd.f32 %v117, %v390
  %v392 = vpop.f32.mrb[0].mxu0
  %v393 = vpop.f32.mrb[0].mxu0
  %v394 = vadd.f32 %v117, %v393
  %v395 = vpop.f32.mrb[0].mxu0
  %396 = vmatprep.mubr.bf16.mxu0 0
  %397 = vmatmul.mubr.bf16.gmra.mrb[0].mxu0 %v175
  %v398 = vpop.f32.mrb[0].mxu0
  %v399 = vadd.f32 %v117, %v398
  %v400 = vpop.f32.mrb[0].mxu0
  %v401 = vpop.f32.mrb[0].mxu0
  %v402 = vadd.f32 %v117, %v401
  %v403 = vpop.f32.mrb[0].mxu0
  %404 = vmatprep.mubr.bf16.mxu0 0
  %405 = vmatmul.mubr.bf16.gmra.mrb[0].mxu0 %v178
  %v406 = vpop.f32.mrb[0].mxu0
  %v407 = vadd.f32 %v117, %v406
  %v408 = vpop.f32.mrb[0].mxu0
  %v409 = vpop.f32.mrb[0].mxu0
  %v410 = vadd.f32 %v117, %v409
  %v411 = vpop.f32.mrb[0].mxu0
  %412 = vmatprep.mubr.bf16.mxu0 0
  %413 = vmatmul.mubr.bf16.gmra.mrb[0].mxu0 %v181
  %v414 = vpop.f32.mrb[0].mxu0
  %v415 = vadd.f32 %v117, %v414
  %v416 = vpop.f32.mrb[0].mxu0
  %v417 = vpop.f32.mrb[0].mxu0
  %v418 = vadd.f32 %v117, %v417
  %v419 = vpop.f32.mrb[0].mxu0
  %420 = vmatprep.mubr.bf16.mxu0 0
  %421 = vmatmul.mubr.bf16.gmra.mrb[0].mxu0 %v184
  %v422 = vpop.f32.mrb[0].mxu0
  %v423 = vadd.f32 %v117, %v422
  %v424 = vpop.f32.mrb[0].mxu0
  %v425 = vpop.f32.mrb[0].mxu0
  %v426 = vadd.f32 %v117, %v425
  %v427 = vpop.f32.mrb[0].mxu0
  %428 = vmatprep.mubr.bf16.mxu0 0
  %429 = vmatmul.mubr.bf16.gmra.mrb[0].mxu0 %v187
  %v430 = vpop.f32.mrb[0].mxu0
  %v431 = vadd.f32 %v117, %v430
  %v432 = vpop.f32.mrb[0].mxu0
  %v433 = vpop.f32.mrb[0].mxu0
  %v434 = vadd.f32 %v117, %v433
  %v435 = vpop.f32.mrb[0].mxu0
  %436 = vmatprep.mubr.bf16.mxu0 0
  %437 = vmatmul.mubr.bf16.gmra.mrb[0].mxu0 %v190
  %v438 = vpop.f32.mrb[0].mxu0
  %v439 = vadd.f32 %v117, %v438
  %v440 = vpop.f32.mrb[0].mxu0
  %v441 = vpop.f32.mrb[0].mxu0
  %v442 = vadd.f32 %v117, %v441
  %v443 = vpop.f32.mrb[0].mxu0
  %444 = vmatprep.mubr.bf16.mxu0 0
  %445 = vmatmul.mubr.bf16.gmra.mrb[0].mxu0 %v193
  %v446 = vpop.f32.mrb[0].mxu0
  %v447 = vadd.f32 %v117, %v446
  %v448 = vpop.f32.mrb[0].mxu0
  %v449 = vpop.f32.mrb[0].mxu0
  %v450 = vadd.f32 %v117, %v449
  %v451 = vpop.f32.mrb[0].mxu0
  %452 = vmatprep.mubr.bf16.mxu0 0
  %453 = vmatmul.mubr.bf16.gmra.mrb[0].mxu0 %v196
  %v454 = vpop.f32.mrb[0].mxu0
  %v455 = vadd.f32 %v117, %v454
  %v456 = vpop.f32.mrb[0].mxu0
  %v457 = vpop.f32.mrb[0].mxu0
  %v458 = vadd.f32 %v117, %v457
  %v459 = vpop.f32.mrb[0].mxu0
  %460 = vmatprep.mubr.bf16.mxu0 0
  %461 = vmatmul.mubr.bf16.gmra.mrb[0].mxu0 %v199
  %v462 = vpop.f32.mrb[0].mxu0
  %v463 = vadd.f32 %v117, %v462
  %v464 = vpop.f32.mrb[0].mxu0
  %v465 = vpop.f32.mrb[0].mxu0
  %v466 = vadd.f32 %v117, %v465
  %v467 = vpop.f32.mrb[0].mxu0
  %468 = vmatprep.mubr.bf16.mxu0 0
  %469 = vmatmul.mubr.bf16.gmra.mrb[0].mxu0 %v202
  %v470 = vpop.f32.mrb[0].mxu0
  %v471 = vadd.f32 %v117, %v470
  %v472 = vpop.f32.mrb[0].mxu0
  %v473 = vpop.f32.mrb[0].mxu0
  %v474 = vadd.f32 %v117, %v473
  %v475 = vpop.f32.mrb[0].mxu0
  %476 = vmatprep.mubr.bf16.mxu0 0
  %477 = vmatmul.mubr.bf16.gmra.mrb[0].mxu0 %v205
  %v478 = vpop.f32.mrb[0].mxu0
  %v479 = vadd.f32 %v117, %v478
  %v480 = vpop.f32.mrb[0].mxu0
  %v481 = vpop.f32.mrb[0].mxu0
  %v482 = vadd.f32 %v117, %v481
  %v483 = vpop.f32.mrb[0].mxu0
  %484 = vmatprep.mubr.bf16.mxu0 0
  %485 = vmatmul.mubr.bf16.gmra.mrb[0].mxu0 %v208
  %v486 = vpop.f32.mrb[0].mxu0
  %v487 = vadd.f32 %v117, %v486
  %v488 = vpop.f32.mrb[0].mxu0
  %v489 = vpop.f32.mrb[0].mxu0
  %v490 = vadd.f32 %v117, %v489
  %v491 = vpop.f32.mrb[0].mxu0
  %492 = vmatprep.mubr.bf16.mxu0 0
  %493 = vmatmul.mubr.bf16.gmra.mrb[0].mxu0 %v211
  %v494 = vpop.f32.mrb[0].mxu0
  %v495 = vadd.f32 %v117, %v494
  %v496 = vpop.f32.mrb[0].mxu0
  %v497 = vpop.f32.mrb[0].mxu0
  %v498 = vadd.f32 %v117, %v497
  %v499 = vpop.f32.mrb[0].mxu0
  %500 = vmatprep.mubr.bf16.mxu0 0
  %501 = vmatmul.mubr.bf16.gmra.mrb[0].mxu0 %v214
  %v502 = vpop.f32.mrb[0].mxu0
  %v503 = vadd.f32 %v117, %v502
  %v504 = vpop.f32.mrb[0].mxu0
  %v505 = vpop.f32.mrb[0].mxu0
  %v506 = vadd.f32 %v117, %v505
  %v507 = vpop.f32.mrb[0].mxu0
  %508 = vdwg.mxu0
  %v509 = vsub.f32 0.0, %v255
  %v510 = vsub.f32 0.0, %v258
  %v511 = vsub.f32 0.0, %v263
  %v512 = vsub.f32 0.0, %v266
  %v513 = vsub.f32 0.0, %v271
  %v514 = vsub.f32 0.0, %v274
  %v515 = vsub.f32 0.0, %v279
  %v516 = vsub.f32 0.0, %v282
  %v517 = vsub.f32 0.0, %v287
  %v518 = vsub.f32 0.0, %v290
  %v519 = vsub.f32 0.0, %v295
  %v520 = vsub.f32 0.0, %v298
  %v521 = vsub.f32 0.0, %v303
  %v522 = vsub.f32 0.0, %v306
  %v523 = vsub.f32 0.0, %v311
  %v524 = vsub.f32 0.0, %v314
  %v525 = vsub.f32 0.0, %v319
  %v526 = vsub.f32 0.0, %v322
  %v527 = vsub.f32 0.0, %v327
  %v528 = vsub.f32 0.0, %v330
  %v529 = vsub.f32 0.0, %v335
  %v530 = vsub.f32 0.0, %v338
  %v531 = vsub.f32 0.0, %v343
  %v532 = vsub.f32 0.0, %v346
  %v533 = vsub.f32 0.0, %v351
  %v534 = vsub.f32 0.0, %v354
  %v535 = vsub.f32 0.0, %v359
  %v536 = vsub.f32 0.0, %v362
  %v537 = vsub.f32 0.0, %v367
  %v538 = vsub.f32 0.0, %v370
  %v539 = vsub.f32 0.0, %v375
  %v540 = vsub.f32 0.0, %v378
  %v541 = vsub.f32 0.0, %v383
  %v542 = vsub.f32 0.0, %v386
  %v543 = vsub.f32 0.0, %v391
  %v544 = vsub.f32 0.0, %v394
  %v545 = vsub.f32 0.0, %v399
  %v546 = vsub.f32 0.0, %v402
  %v547 = vsub.f32 0.0, %v407
  %v548 = vsub.f32 0.0, %v410
  %v549 = vsub.f32 0.0, %v415
  %v550 = vsub.f32 0.0, %v418
  %v551 = vsub.f32 0.0, %v423
  %v552 = vsub.f32 0.0, %v426
  %v553 = vsub.f32 0.0, %v431
  %v554 = vsub.f32 0.0, %v434
  %v555 = vsub.f32 0.0, %v439
  %v556 = vsub.f32 0.0, %v442
  %v557 = vsub.f32 0.0, %v447
  %v558 = vsub.f32 0.0, %v450
  %v559 = vsub.f32 0.0, %v455
  %v560 = vsub.f32 0.0, %v458
  %v561 = vsub.f32 0.0, %v463
  %v562 = vsub.f32 0.0, %v466
  %v563 = vsub.f32 0.0, %v471
  %v564 = vsub.f32 0.0, %v474
  %v565 = vsub.f32 0.0, %v479
  %v566 = vsub.f32 0.0, %v482
  %v567 = vsub.f32 0.0, %v487
  %v568 = vsub.f32 0.0, %v490
  %v569 = vsub.f32 0.0, %v495
  %v570 = vsub.f32 0.0, %v498
  %v571 = vsub.f32 0.0, %v503
  %v572 = vsub.f32 0.0, %v506
  %v573 = vmul.f32 %v509, 1.442695
  %v574 = vpow.pop %v573
  %v575 = vmul.f32 %v510, 1.442695
  %v576 = vpow.pop %v575
  %v577 = vmul.f32 %v511, 1.442695
  %v578 = vpow.pop %v577
  %v579 = vmul.f32 %v512, 1.442695
  %v580 = vpow.pop %v579
  %v581 = vmul.f32 %v513, 1.442695
  %v582 = vpow.pop %v581
  %v583 = vmul.f32 %v514, 1.442695
  %v584 = vpow.pop %v583
  %v585 = vmul.f32 %v515, 1.442695
  %v586 = vpow.pop %v585
  %v587 = vmul.f32 %v516, 1.442695
  %v588 = vpow.pop %v587
  %v589 = vmul.f32 %v517, 1.442695
  %v590 = vpow.pop %v589
  %v591 = vmul.f32 %v518, 1.442695
  %v592 = vpow.pop %v591
  %v593 = vmul.f32 %v519, 1.442695
  %v594 = vpow.pop %v593
  %v595 = vmul.f32 %v520, 1.442695
  %v596 = vpow.pop %v595
  %v597 = vmul.f32 %v521, 1.442695
  %v598 = vpow.pop %v597
  %v599 = vmul.f32 %v522, 1.442695
  %v600 = vpow.pop %v599
  %v601 = vmul.f32 %v523, 1.442695
  %v602 = vpow.pop %v601
  %v603 = vmul.f32 %v524, 1.442695
  %v604 = vpow.pop %v603
  %v605 = vmul.f32 %v525, 1.442695
  %v606 = vpow.pop %v605
  %v607 = vmul.f32 %v526, 1.442695
  %v608 = vpow.pop %v607
  %v609 = vmul.f32 %v527, 1.442695
  %v610 = vpow.pop %v609
  %v611 = vmul.f32 %v528, 1.442695
  %v612 = vpow.pop %v611
  %v613 = vmul.f32 %v529, 1.442695
  %v614 = vpow.pop %v613
  %v615 = vmul.f32 %v530, 1.442695
  %v616 = vpow.pop %v615
  %v617 = vmul.f32 %v531, 1.442695
  %v618 = vpow.pop %v617
  %v619 = vmul.f32 %v532, 1.442695
  %v620 = vpow.pop %v619
  %v621 = vmul.f32 %v533, 1.442695
  %v622 = vpow.pop %v621
  %v623 = vmul.f32 %v534, 1.442695
  %v624 = vpow.pop %v623
  %v625 = vmul.f32 %v535, 1.442695
  %v626 = vpow.pop %v625
  %v627 = vmul.f32 %v536, 1.442695
  %v628 = vpow.pop %v627
  %v629 = vmul.f32 %v537, 1.442695
  %v630 = vpow.pop %v629
  %v631 = vmul.f32 %v538, 1.442695
  %v632 = vpow.pop %v631
  %v633 = vmul.f32 %v539, 1.442695
  %v634 = vpow.pop %v633
  %v635 = vmul.f32 %v540, 1.442695
  %v636 = vpow.pop %v635
  %v637 = vmul.f32 %v541, 1.442695
  %v638 = vpow.pop %v637
  %v639 = vmul.f32 %v542, 1.442695
  %v640 = vpow.pop %v639
  %v641 = vmul.f32 %v543, 1.442695
  %v642 = vpow.pop %v641
  %v643 = vmul.f32 %v544, 1.442695
  %v644 = vpow.pop %v643
  %v645 = vmul.f32 %v545, 1.442695
  %v646 = vpow.pop %v645
  %v647 = vmul.f32 %v546, 1.442695
  %v648 = vpow.pop %v647
  %v649 = vmul.f32 %v547, 1.442695
  %v650 = vpow.pop %v649
  %v651 = vmul.f32 %v548, 1.442695
  %v652 = vpow.pop %v651
  %v653 = vmul.f32 %v549, 1.442695
  %v654 = vpow.pop %v653
  %v655 = vmul.f32 %v550, 1.442695
  %v656 = vpow.pop %v655
  %v657 = vmul.f32 %v551, 1.442695
  %v658 = vpow.pop %v657
  %v659 = vmul.f32 %v552, 1.442695
  %v660 = vpow.pop %v659
  %v661 = vmul.f32 %v553, 1.442695
  %v662 = vpow.pop %v661
  %v663 = vmul.f32 %v554, 1.442695
  %v664 = vpow.pop %v663
  %v665 = vmul.f32 %v555, 1.442695
  %v666 = vpow.pop %v665
  %v667 = vmul.f32 %v556, 1.442695
  %v668 = vpow.pop %v667
  %v669 = vmul.f32 %v557, 1.442695
  %v670 = vpow.pop %v669
  %v671 = vmul.f32 %v558, 1.442695
  %v672 = vpow.pop %v671
  %v673 = vmul.f32 %v559, 1.442695
  %v674 = vpow.pop %v673
  %v675 = vmul.f32 %v560, 1.442695
  %v676 = vpow.pop %v675
  %v677 = vmul.f32 %v561, 1.442695
  %v678 = vpow.pop %v677
  %v679 = vmul.f32 %v562, 1.442695
  %v680 = vpow.pop %v679
  %v681 = vmul.f32 %v563, 1.442695
  %v682 = vpow.pop %v681
  %v683 = vmul.f32 %v564, 1.442695
  %v684 = vpow.pop %v683
  %v685 = vmul.f32 %v565, 1.442695
  %v686 = vpow.pop %v685
  %v687 = vmul.f32 %v566, 1.442695
  %v688 = vpow.pop %v687
  %v689 = vmul.f32 %v567, 1.442695
  %v690 = vpow.pop %v689
  %v691 = vmul.f32 %v568, 1.442695
  %v692 = vpow.pop %v691
  %v693 = vmul.f32 %v569, 1.442695
  %v694 = vpow.pop %v693
  %v695 = vmul.f32 %v570, 1.442695
  %v696 = vpow.pop %v695
  %v697 = vmul.f32 %v571, 1.442695
  %v698 = vpow.pop %v697
  %v699 = vmul.f32 %v572, 1.442695
  %v700 = vpow.pop %v699
  %v701 = vadd.f32 %v574, 1.0
  %v702 = vadd.f32 %v576, 1.0
  %v703 = vadd.f32 %v578, 1.0
  %v704 = vadd.f32 %v580, 1.0
  %v705 = vadd.f32 %v582, 1.0
  %v706 = vadd.f32 %v584, 1.0
  %v707 = vadd.f32 %v586, 1.0
  %v708 = vadd.f32 %v588, 1.0
  %v709 = vadd.f32 %v590, 1.0
  %v710 = vadd.f32 %v592, 1.0
  %v711 = vadd.f32 %v594, 1.0
  %v712 = vadd.f32 %v596, 1.0
  %v713 = vadd.f32 %v598, 1.0
  %v714 = vadd.f32 %v600, 1.0
  %v715 = vadd.f32 %v602, 1.0
  %v716 = vadd.f32 %v604, 1.0
  %v717 = vadd.f32 %v606, 1.0
  %v718 = vadd.f32 %v608, 1.0
  %v719 = vadd.f32 %v610, 1.0
  %v720 = vadd.f32 %v612, 1.0
  %v721 = vadd.f32 %v614, 1.0
  %v722 = vadd.f32 %v616, 1.0
  %v723 = vadd.f32 %v618, 1.0
  %v724 = vadd.f32 %v620, 1.0
  %v725 = vadd.f32 %v622, 1.0
  %v726 = vadd.f32 %v624, 1.0
  %v727 = vadd.f32 %v626, 1.0
  %v728 = vadd.f32 %v628, 1.0
  %v729 = vadd.f32 %v630, 1.0
  %v730 = vadd.f32 %v632, 1.0
  %v731 = vadd.f32 %v634, 1.0
  %v732 = vadd.f32 %v636, 1.0
  %v733 = vadd.f32 %v638, 1.0
  %v734 = vadd.f32 %v640, 1.0
  %v735 = vadd.f32 %v642, 1.0
  %v736 = vadd.f32 %v644, 1.0
  %v737 = vadd.f32 %v646, 1.0
  %v738 = vadd.f32 %v648, 1.0
  %v739 = vadd.f32 %v650, 1.0
  %v740 = vadd.f32 %v652, 1.0
  %v741 = vadd.f32 %v654, 1.0
  %v742 = vadd.f32 %v656, 1.0
  %v743 = vadd.f32 %v658, 1.0
  %v744 = vadd.f32 %v660, 1.0
  %v745 = vadd.f32 %v662, 1.0
  %v746 = vadd.f32 %v664, 1.0
  %v747 = vadd.f32 %v666, 1.0
  %v748 = vadd.f32 %v668, 1.0
  %v749 = vadd.f32 %v670, 1.0
  %v750 = vadd.f32 %v672, 1.0
  %v751 = vadd.f32 %v674, 1.0
  %v752 = vadd.f32 %v676, 1.0
  %v753 = vadd.f32 %v678, 1.0
  %v754 = vadd.f32 %v680, 1.0
  %v755 = vadd.f32 %v682, 1.0
  %v756 = vadd.f32 %v684, 1.0
  %v757 = vadd.f32 %v686, 1.0
  %v758 = vadd.f32 %v688, 1.0
  %v759 = vadd.f32 %v690, 1.0
  %v760 = vadd.f32 %v692, 1.0
  %v761 = vadd.f32 %v694, 1.0
  %v762 = vadd.f32 %v696, 1.0
  %v763 = vadd.f32 %v698, 1.0
  %v764 = vadd.f32 %v700, 1.0
  %v765 = vrcp.pop %v701
  %v766 = vrcp.pop %v702
  %v767 = vrcp.pop %v703
  %v768 = vrcp.pop %v704
  %v769 = vrcp.pop %v705
  %v770 = vrcp.pop %v706
  %v771 = vrcp.pop %v707
  %v772 = vrcp.pop %v708
  %v773 = vrcp.pop %v709
  %v774 = vrcp.pop %v710
  %v775 = vrcp.pop %v711
  %v776 = vrcp.pop %v712
  %v777 = vrcp.pop %v713
  %v778 = vrcp.pop %v714
  %v779 = vrcp.pop %v715
  %v780 = vrcp.pop %v716
  %v781 = vrcp.pop %v717
  %v782 = vrcp.pop %v718
  %v783 = vrcp.pop %v719
  %v784 = vrcp.pop %v720
  %v785 = vrcp.pop %v721
  %v786 = vrcp.pop %v722
  %v787 = vrcp.pop %v723
  %v788 = vrcp.pop %v724
  %v789 = vrcp.pop %v725
  %v790 = vrcp.pop %v726
  %v791 = vrcp.pop %v727
  %v792 = vrcp.pop %v728
  %v793 = vrcp.pop %v729
  %v794 = vrcp.pop %v730
  %v795 = vrcp.pop %v731
  %v796 = vrcp.pop %v732
  %v797 = vrcp.pop %v733
  %v798 = vrcp.pop %v734
  %v799 = vrcp.pop %v735
  %v800 = vrcp.pop %v736
  %v801 = vrcp.pop %v737
  %v802 = vrcp.pop %v738
  %v803 = vrcp.pop %v739
  %v804 = vrcp.pop %v740
  %v805 = vrcp.pop %v741
  %v806 = vrcp.pop %v742
  %v807 = vrcp.pop %v743
  %v808 = vrcp.pop %v744
  %v809 = vrcp.pop %v745
  %v810 = vrcp.pop %v746
  %v811 = vrcp.pop %v747
  %v812 = vrcp.pop %v748
  %v813 = vrcp.pop %v749
  %v814 = vrcp.pop %v750
  %v815 = vrcp.pop %v751
  %v816 = vrcp.pop %v752
  %v817 = vrcp.pop %v753
  %v818 = vrcp.pop %v754
  %v819 = vrcp.pop %v755
  %v820 = vrcp.pop %v756
  %v821 = vrcp.pop %v757
  %v822 = vrcp.pop %v758
  %v823 = vrcp.pop %v759
  %v824 = vrcp.pop %v760
  %v825 = vrcp.pop %v761
  %v826 = vrcp.pop %v762
  %v827 = vrcp.pop %v763
  %v828 = vrcp.pop %v764
  %v829 = vmul.f32 %v255, %v765
  %v830 = vmul.f32 %v258, %v766
  %v831 = vmul.f32 %v263, %v767
  %v832 = vmul.f32 %v266, %v768
  %v833 = vmul.f32 %v271, %v769
  %v834 = vmul.f32 %v274, %v770
  %v835 = vmul.f32 %v279, %v771
  %v836 = vmul.f32 %v282, %v772
  %v837 = vmul.f32 %v287, %v773
  %v838 = vmul.f32 %v290, %v774
  %v839 = vmul.f32 %v295, %v775
  %v840 = vmul.f32 %v298, %v776
  %v841 = vmul.f32 %v303, %v777
  %v842 = vmul.f32 %v306, %v778
  %v843 = vmul.f32 %v311, %v779
  %v844 = vmul.f32 %v314, %v780
  %v845 = vmul.f32 %v319, %v781
  %v846 = vmul.f32 %v322, %v782
  %v847 = vmul.f32 %v327, %v783
  %v848 = vmul.f32 %v330, %v784
  %v849 = vmul.f32 %v335, %v785
  %v850 = vmul.f32 %v338, %v786
  %v851 = vmul.f32 %v343, %v787
  %v852 = vmul.f32 %v346, %v788
  %v853 = vmul.f32 %v351, %v789
  %v854 = vmul.f32 %v354, %v790
  %v855 = vmul.f32 %v359, %v791
  %v856 = vmul.f32 %v362, %v792
  %v857 = vmul.f32 %v367, %v793
  %v858 = vmul.f32 %v370, %v794
  %v859 = vmul.f32 %v375, %v795
  %v860 = vmul.f32 %v378, %v796
  %v861 = vmul.f32 %v383, %v797
  %v862 = vmul.f32 %v386, %v798
  %v863 = vmul.f32 %v391, %v799
  %v864 = vmul.f32 %v394, %v800
  %v865 = vmul.f32 %v399, %v801
  %v866 = vmul.f32 %v402, %v802
  %v867 = vmul.f32 %v407, %v803
  %v868 = vmul.f32 %v410, %v804
  %v869 = vmul.f32 %v415, %v805
  %v870 = vmul.f32 %v418, %v806
  %v871 = vmul.f32 %v423, %v807
  %v872 = vmul.f32 %v426, %v808
  %v873 = vmul.f32 %v431, %v809
  %v874 = vmul.f32 %v434, %v810
  %v875 = vmul.f32 %v439, %v811
  %v876 = vmul.f32 %v442, %v812
  %v877 = vmul.f32 %v447, %v813
  %v878 = vmul.f32 %v450, %v814
  %v879 = vmul.f32 %v455, %v815
  %v880 = vmul.f32 %v458, %v816
  %v881 = vmul.f32 %v463, %v817
  %v882 = vmul.f32 %v466, %v818
  %v883 = vmul.f32 %v471, %v819
  %v884 = vmul.f32 %v474, %v820
  %v885 = vmul.f32 %v479, %v821
  %v886 = vmul.f32 %v482, %v822
  %v887 = vmul.f32 %v487, %v823
  %v888 = vmul.f32 %v490, %v824
  %v889 = vmul.f32 %v495, %v825
  %v890 = vmul.f32 %v498, %v826
  %v891 = vmul.f32 %v503, %v827
  %v892 = vmul.f32 %v506, %v828
  %v893 = vpack.c.bf16 %v830, %v829
  %v894 = vpack.c.bf16 %v832, %v831
  %v895 = vpack.c.bf16 %v834, %v833
  %v896 = vpack.c.bf16 %v836, %v835
  %v897 = vpack.c.bf16 %v838, %v837
  %v898 = vpack.c.bf16 %v840, %v839
  %v899 = vpack.c.bf16 %v842, %v841
  %v900 = vpack.c.bf16 %v844, %v843
  %v901 = vpack.c.bf16 %v846, %v845
  %v902 = vpack.c.bf16 %v848, %v847
  %v903 = vpack.c.bf16 %v850, %v849
  %v904 = vpack.c.bf16 %v852, %v851
  %v905 = vpack.c.bf16 %v854, %v853
  %v906 = vpack.c.bf16 %v856, %v855
  %v907 = vpack.c.bf16 %v858, %v857
  %v908 = vpack.c.bf16 %v860, %v859
  %v909 = vpack.c.bf16 %v862, %v861
  %v910 = vpack.c.bf16 %v864, %v863
  %v911 = vpack.c.bf16 %v866, %v865
  %v912 = vpack.c.bf16 %v868, %v867
  %v913 = vpack.c.bf16 %v870, %v869
  %v914 = vpack.c.bf16 %v872, %v871
  %v915 = vpack.c.bf16 %v874, %v873
  %v916 = vpack.c.bf16 %v876, %v875
  %v917 = vpack.c.bf16 %v878, %v877
  %v918 = vpack.c.bf16 %v880, %v879
  %v919 = vpack.c.bf16 %v882, %v881
  %v920 = vpack.c.bf16 %v884, %v883
  %v921 = vpack.c.bf16 %v886, %v885
  %v922 = vpack.c.bf16 %v888, %v887
  %v923 = vpack.c.bf16 %v890, %v889
  %v924 = vpack.c.bf16 %v892, %v891
  %v957 = vunpack.c.l.b16 %v893
  %v958 = vunpack.c.h.b16 %v893
  %v959 = vunpack.c.l.b16 %v894
  %v960 = vunpack.c.h.b16 %v894
  %v961 = vunpack.c.l.b16 %v895
  %v962 = vunpack.c.h.b16 %v895
  %v963 = vunpack.c.l.b16 %v896
  %v964 = vunpack.c.h.b16 %v896
  %v965 = vunpack.c.l.b16 %v897
  %v966 = vunpack.c.h.b16 %v897
  %v967 = vunpack.c.l.b16 %v898
  %v968 = vunpack.c.h.b16 %v898
  %v969 = vunpack.c.l.b16 %v899
  %v970 = vunpack.c.h.b16 %v899
  %v971 = vunpack.c.l.b16 %v900
  %v972 = vunpack.c.h.b16 %v900
  %v973 = vunpack.c.l.b16 %v901
  %v974 = vunpack.c.h.b16 %v901
  %v975 = vunpack.c.l.b16 %v902
  %v976 = vunpack.c.h.b16 %v902
  %v977 = vunpack.c.l.b16 %v903
  %v978 = vunpack.c.h.b16 %v903
  %v979 = vunpack.c.l.b16 %v904
  %v980 = vunpack.c.h.b16 %v904
  %v981 = vunpack.c.l.b16 %v905
  %v982 = vunpack.c.h.b16 %v905
  %v983 = vunpack.c.l.b16 %v906
  %v984 = vunpack.c.h.b16 %v906
  %v985 = vunpack.c.l.b16 %v907
  %v986 = vunpack.c.h.b16 %v907
  %v987 = vunpack.c.l.b16 %v908
  %v988 = vunpack.c.h.b16 %v908
  %v989 = vunpack.c.l.b16 %v909
  %v990 = vunpack.c.h.b16 %v909
  %v991 = vunpack.c.l.b16 %v910
  %v992 = vunpack.c.h.b16 %v910
  %v993 = vunpack.c.l.b16 %v911
  %v994 = vunpack.c.h.b16 %v911
  %v995 = vunpack.c.l.b16 %v912
  %v996 = vunpack.c.h.b16 %v912
  %v997 = vunpack.c.l.b16 %v913
  %v998 = vunpack.c.h.b16 %v913
  %v999 = vunpack.c.l.b16 %v914
  %v1000 = vunpack.c.h.b16 %v914
  %v1001 = vunpack.c.l.b16 %v915
  %v1002 = vunpack.c.h.b16 %v915
  %v1003 = vunpack.c.l.b16 %v916
  %v1004 = vunpack.c.h.b16 %v916
  %v1005 = vunpack.c.l.b16 %v917
  %v1006 = vunpack.c.h.b16 %v917
  %v1007 = vunpack.c.l.b16 %v918
  %v1008 = vunpack.c.h.b16 %v918
  %v1009 = vunpack.c.l.b16 %v919
  %v1010 = vunpack.c.h.b16 %v919
  %v1011 = vunpack.c.l.b16 %v920
  %v1012 = vunpack.c.h.b16 %v920
  %v1013 = vunpack.c.l.b16 %v921
  %v1014 = vunpack.c.h.b16 %v921
  %v1015 = vunpack.c.l.b16 %v922
  %v1016 = vunpack.c.h.b16 %v922
  %v1017 = vunpack.c.l.b16 %v923
  %v1018 = vunpack.c.h.b16 %v923
  %v1019 = vunpack.c.l.b16 %v924
  %v1020 = vunpack.c.h.b16 %v924
  %v1021 = vpack.c.b16 %v957, %v957
  %v1022 = vpack.c.b16 %v958, %v958
  %v1023 = vpack.c.b16 %v959, %v959
  %v1024 = vpack.c.b16 %v960, %v960
  %v1025 = vpack.c.b16 %v961, %v961
  %v1026 = vpack.c.b16 %v962, %v962
  %v1027 = vpack.c.b16 %v963, %v963
  %v1028 = vpack.c.b16 %v964, %v964
  %v1029 = vpack.c.b16 %v965, %v965
  %v1030 = vpack.c.b16 %v966, %v966
  %v1031 = vpack.c.b16 %v967, %v967
  %v1032 = vpack.c.b16 %v968, %v968
  %v1033 = vpack.c.b16 %v969, %v969
  %v1034 = vpack.c.b16 %v970, %v970
  %v1035 = vpack.c.b16 %v971, %v971
  %v1036 = vpack.c.b16 %v972, %v972
  %v1037 = vpack.c.b16 %v973, %v973
  %v1038 = vpack.c.b16 %v974, %v974
  %v1039 = vpack.c.b16 %v975, %v975
  %v1040 = vpack.c.b16 %v976, %v976
  %v1041 = vpack.c.b16 %v977, %v977
  %v1042 = vpack.c.b16 %v978, %v978
  %v1043 = vpack.c.b16 %v979, %v979
  %v1044 = vpack.c.b16 %v980, %v980
  %v1045 = vpack.c.b16 %v981, %v981
  %v1046 = vpack.c.b16 %v982, %v982
  %v1047 = vpack.c.b16 %v983, %v983
  %v1048 = vpack.c.b16 %v984, %v984
  %v1049 = vpack.c.b16 %v985, %v985
  %v1050 = vpack.c.b16 %v986, %v986
  %v1051 = vpack.c.b16 %v987, %v987
  %v1052 = vpack.c.b16 %v988, %v988
  %v1053 = vpack.c.b16 %v989, %v989
  %v1054 = vpack.c.b16 %v990, %v990
  %v1055 = vpack.c.b16 %v991, %v991
  %v1056 = vpack.c.b16 %v992, %v992
  %v1057 = vpack.c.b16 %v993, %v993
  %v1058 = vpack.c.b16 %v994, %v994
  %v1059 = vpack.c.b16 %v995, %v995
  %v1060 = vpack.c.b16 %v996, %v996
  %v1061 = vpack.c.b16 %v997, %v997
  %v1062 = vpack.c.b16 %v998, %v998
  %v1063 = vpack.c.b16 %v999, %v999
  %v1064 = vpack.c.b16 %v1000, %v1000
  %v1065 = vpack.c.b16 %v1001, %v1001
  %v1066 = vpack.c.b16 %v1002, %v1002
  %v1067 = vpack.c.b16 %v1003, %v1003
  %v1068 = vpack.c.b16 %v1004, %v1004
  %v1069 = vpack.c.b16 %v1005, %v1005
  %v1070 = vpack.c.b16 %v1006, %v1006
  %v1071 = vpack.c.b16 %v1007, %v1007
  %v1072 = vpack.c.b16 %v1008, %v1008
  %v1073 = vpack.c.b16 %v1009, %v1009
  %v1074 = vpack.c.b16 %v1010, %v1010
  %v1075 = vpack.c.b16 %v1011, %v1011
  %v1076 = vpack.c.b16 %v1012, %v1012
  %v1077 = vpack.c.b16 %v1013, %v1013
  %v1078 = vpack.c.b16 %v1014, %v1014
  %v1079 = vpack.c.b16 %v1015, %v1015
  %v1080 = vpack.c.b16 %v1016, %v1016
  %v1081 = vpack.c.b16 %v1017, %v1017
  %v1082 = vpack.c.b16 %v1018, %v1018
  %v1083 = vpack.c.b16 %v1019, %v1019
  %v1084 = vpack.c.b16 %v1020, %v1020
  %vm1149 = vcmask 11264
  %1150 = vst.msk [vmem:[%s3] sm:$0xf] %vm1149, %v1021
  %1151 = vst.msk [vmem:[%s3 + $0x4] sm:$0xf] %vm1149, %v1022
  %1152 = vst.msk [vmem:[%s3 + $0x8] sm:$0xf] %vm1149, %v1023
  %1153 = vst.msk [vmem:[%s3 + $0xc] sm:$0xf] %vm1149, %v1024
  %1154 = vst.msk [vmem:[%s3 + $0x10] sm:$0xf] %vm1149, %v1025
  %1155 = vst.msk [vmem:[%s3 + $0x14] sm:$0xf] %vm1149, %v1026
  %1156 = vst.msk [vmem:[%s3 + $0x18] sm:$0xf] %vm1149, %v1027
  %1157 = vst.msk [vmem:[%s3 + $0x1c] sm:$0xf] %vm1149, %v1028
  %1158 = vst.msk [vmem:[%s3 + $0x20] sm:$0xf] %vm1149, %v1029
  %1159 = vst.msk [vmem:[%s3 + $0x24] sm:$0xf] %vm1149, %v1030
  %1160 = vst.msk [vmem:[%s3 + $0x28] sm:$0xf] %vm1149, %v1031
  %1161 = vst.msk [vmem:[%s3 + $0x2c] sm:$0xf] %vm1149, %v1032
  %1162 = vst.msk [vmem:[%s3 + $0x30] sm:$0xf] %vm1149, %v1033
  %1163 = vst.msk [vmem:[%s3 + $0x34] sm:$0xf] %vm1149, %v1034
  %1164 = vst.msk [vmem:[%s3 + $0x38] sm:$0xf] %vm1149, %v1035
  %1165 = vst.msk [vmem:[%s3 + $0x3c] sm:$0xf] %vm1149, %v1036
  %1166 = vst.msk [vmem:[%s3 + $0x40] sm:$0xf] %vm1149, %v1037
  %1167 = vst.msk [vmem:[%s3 + $0x44] sm:$0xf] %vm1149, %v1038
  %1168 = vst.msk [vmem:[%s3 + $0x48] sm:$0xf] %vm1149, %v1039
  %1169 = vst.msk [vmem:[%s3 + $0x4c] sm:$0xf] %vm1149, %v1040
  %1170 = vst.msk [vmem:[%s3 + $0x50] sm:$0xf] %vm1149, %v1041
  %1171 = vst.msk [vmem:[%s3 + $0x54] sm:$0xf] %vm1149, %v1042
  %1172 = vst.msk [vmem:[%s3 + $0x58] sm:$0xf] %vm1149, %v1043
  %1173 = vst.msk [vmem:[%s3 + $0x5c] sm:$0xf] %vm1149, %v1044
  %1174 = vst.msk [vmem:[%s3 + $0x60] sm:$0xf] %vm1149, %v1045
  %1175 = vst.msk [vmem:[%s3 + $0x64] sm:$0xf] %vm1149, %v1046
  %1176 = vst.msk [vmem:[%s3 + $0x68] sm:$0xf] %vm1149, %v1047
  %1177 = vst.msk [vmem:[%s3 + $0x6c] sm:$0xf] %vm1149, %v1048
  %1178 = vst.msk [vmem:[%s3 + $0x70] sm:$0xf] %vm1149, %v1049
  %1179 = vst.msk [vmem:[%s3 + $0x74] sm:$0xf] %vm1149, %v1050
  %1180 = vst.msk [vmem:[%s3 + $0x78] sm:$0xf] %vm1149, %v1051
  %1181 = vst.msk [vmem:[%s3 + $0x7c] sm:$0xf] %vm1149, %v1052
  %1182 = vst.msk [vmem:[%s3 + $0x80] sm:$0xf] %vm1149, %v1053
  %1183 = vst.msk [vmem:[%s3 + $0x84] sm:$0xf] %vm1149, %v1054
  %1184 = vst.msk [vmem:[%s3 + $0x88] sm:$0xf] %vm1149, %v1055
  %1185 = vst.msk [vmem:[%s3 + $0x8c] sm:$0xf] %vm1149, %v1056
  %1186 = vst.msk [vmem:[%s3 + $0x90] sm:$0xf] %vm1149, %v1057
  %1187 = vst.msk [vmem:[%s3 + $0x94] sm:$0xf] %vm1149, %v1058
  %1188 = vst.msk [vmem:[%s3 + $0x98] sm:$0xf] %vm1149, %v1059
  %1189 = vst.msk [vmem:[%s3 + $0x9c] sm:$0xf] %vm1149, %v1060
  %1190 = vst.msk [vmem:[%s3 + $0xa0] sm:$0xf] %vm1149, %v1061
  %1191 = vst.msk [vmem:[%s3 + $0xa4] sm:$0xf] %vm1149, %v1062
  %1192 = vst.msk [vmem:[%s3 + $0xa8] sm:$0xf] %vm1149, %v1063
  %1193 = vst.msk [vmem:[%s3 + $0xac] sm:$0xf] %vm1149, %v1064
  %1194 = vst.msk [vmem:[%s3 + $0xb0] sm:$0xf] %vm1149, %v1065
  %1195 = vst.msk [vmem:[%s3 + $0xb4] sm:$0xf] %vm1149, %v1066
  %1196 = vst.msk [vmem:[%s3 + $0xb8] sm:$0xf] %vm1149, %v1067
  %1197 = vst.msk [vmem:[%s3 + $0xbc] sm:$0xf] %vm1149, %v1068
  %1198 = vst.msk [vmem:[%s3 + $0xc0] sm:$0xf] %vm1149, %v1069
  %1199 = vst.msk [vmem:[%s3 + $0xc4] sm:$0xf] %vm1149, %v1070
  %1200 = vst.msk [vmem:[%s3 + $0xc8] sm:$0xf] %vm1149, %v1071
  %1201 = vst.msk [vmem:[%s3 + $0xcc] sm:$0xf] %vm1149, %v1072
  %1202 = vst.msk [vmem:[%s3 + $0xd0] sm:$0xf] %vm1149, %v1073
  %1203 = vst.msk [vmem:[%s3 + $0xd4] sm:$0xf] %vm1149, %v1074
  %1204 = vst.msk [vmem:[%s3 + $0xd8] sm:$0xf] %vm1149, %v1075
  %1205 = vst.msk [vmem:[%s3 + $0xdc] sm:$0xf] %vm1149, %v1076
  %1206 = vst.msk [vmem:[%s3 + $0xe0] sm:$0xf] %vm1149, %v1077
  %1207 = vst.msk [vmem:[%s3 + $0xe4] sm:$0xf] %vm1149, %v1078
  %1208 = vst.msk [vmem:[%s3 + $0xe8] sm:$0xf] %vm1149, %v1079
  %1209 = vst.msk [vmem:[%s3 + $0xec] sm:$0xf] %vm1149, %v1080
  %1210 = vst.msk [vmem:[%s3 + $0xf0] sm:$0xf] %vm1149, %v1081
  %1211 = vst.msk [vmem:[%s3 + $0xf4] sm:$0xf] %vm1149, %v1082
  %1212 = vst.msk [vmem:[%s3 + $0xf8] sm:$0xf] %vm1149, %v1083
  %1213 = vst.msk [vmem:[%s3 + $0xfc] sm:$0xf] %vm1149, %v1084
  // Predicated region
  $region14: #{tpu_custom_call.1} parent=0 // pred_check
    _
  $region15: #{tpu_custom_call.1} parent=0 // pred_check_branch
    %1215 = sbr.rel (0) target = $region17
  $region16: #{tpu_custom_call.1} parent=0 // pred_region
    _
  $region17: #{tpu_custom_call.1} parent=0 // pred_fallthru
    _
  // Predicated region
  $region18: #{tpu_custom_call.1} parent=0 // pred_check
    _
  $region19: #{tpu_custom_call.1} parent=0 // pred_check_branch
    %1217 = sbr.rel (0) target = $region21
  $region20: #{tpu_custom_call.1} parent=0 // pred_region
    _
  $region21: #{tpu_custom_call.1} parent=0 // pred_fallthru
    _

</llo_original>
